<compile_context>
chip_gen: v5e
topology: v5e:2x2
jax: 0.10.0
libtpu: 0.0.40
codegen_flags: <defaults>
</compile_context>

<pallas_src>
import functools

import jax
import jax.numpy as jnp
from jax.experimental import pallas as pl
from jax.experimental.pallas import tpu as pltpu

_NEG_BIG = -1e30  # "effectively -inf" padding that stays finite in f32


def _focal_logit_adjusted_kernel(logits_ref, log_priors_ref, targets_ref,
                                 out_ref, *, gamma, tau, b_orig, tile_b):
    # logits_ref:     (TILE_B, C_pad) f32
    # log_priors_ref: (1, C_pad)      f32
    # targets_ref:    (TILE_B, 1)     i32
    # out_ref:        (1, 8, 128)     f32   (per-tile partial sum, broadcast)
    logits = logits_ref[...].astype(jnp.float32)
    log_priors = log_priors_ref[...].astype(jnp.float32)
    targets = targets_ref[...]

    tb, c_pad = logits.shape

    # Logit adjustment (broadcast over the batch rows).
    adjusted = logits + tau * log_priors                      # (TB, Cp)

    # Log-space softmax statistics (single exp over the (TB, Cp) tile).
    m = jnp.max(adjusted, axis=1, keepdims=True)              # (TB, 1)
    denom = jnp.sum(jnp.exp(adjusted - m), axis=1, keepdims=True)

    # Target adjusted logit via masked max (no gather / no (TB,Cp) probs).
    col_ids = jax.lax.broadcasted_iota(jnp.int32, (tb, c_pad), 1)
    target_adj = jnp.max(jnp.where(col_ids == targets, adjusted, _NEG_BIG),
                         axis=1, keepdims=True)               # (TB, 1)

    log_p = (target_adj - m) - jnp.log(denom)                 # log softmax @ target
    p = jnp.exp(log_p)                                        # (TB, 1)

    # Keep the module's exact semantics: -log(p + 1e-9).
    ce_term = -jnp.log(p + 1e-9)

    one_minus_p = 1.0 - p
    if float(gamma).is_integer():
        g = int(gamma)
        if g == 0:
            focal_term = jnp.ones_like(one_minus_p)
        else:
            focal_term = jax.lax.integer_pow(one_minus_p, g)  # VPU multiplies
    else:
        focal_term = one_minus_p ** gamma                      # general pow fallback

    loss = focal_term * ce_term                               # (TB, 1)

    # Mask out padded batch rows.
    row_ids = (jax.lax.broadcasted_iota(jnp.int32, (tb, 1), 0)
               + pl.program_id(0) * tile_b)
    loss = jnp.where(row_ids < b_orig, loss, 0.0)

    partial = jnp.sum(loss)
    out_ref[...] = jnp.full((1, 8, 128), partial, dtype=jnp.float32)


def focal_logit_adjusted_loss(logits, targets, class_priors,
                              gamma=1.0, tau=1.0, tile_b=256):
    """JAX/Pallas equivalent of FocalLogitAdjustedLoss.forward.

    Args:
      logits: (B, C) float array.
      targets: (B,) int array of class indices.
      class_priors: (C,) float array of prior probabilities.
    Returns:
      scalar float32 loss (mean over the batch).
    """
    logits = jnp.asarray(logits, jnp.float32)
    B, C = logits.shape

    def _rup(x, m):
        return ((x + m - 1) // m) * m

    c_pad = _rup(C, 128)                       # lane-dense class axis
    tb = min(int(tile_b), _rup(B, 8))          # batch tile (multiple of 8)
    b_pad = _rup(B, tb)
    num_tiles = b_pad // tb

    # Pad class axis with -1e30 (exp underflows to 0 in the softmax),
    # then pad batch rows with zeros (they are masked out in-kernel).
    logits_p = jnp.pad(logits, ((0, 0), (0, c_pad - C)),
                       constant_values=_NEG_BIG)
    logits_p = jnp.pad(logits_p, ((0, b_pad - B), (0, 0)),
                       constant_values=0.0)

    log_priors = jnp.log(jnp.asarray(class_priors, jnp.float32) + 1e-9)
    log_priors_p = jnp.pad(log_priors, (0, c_pad - C)).reshape(1, c_pad)

    targets_p = jnp.pad(jnp.asarray(targets, jnp.int32).reshape(B, 1),
                        ((0, b_pad - B), (0, 0)), constant_values=0)

    kernel = functools.partial(_focal_logit_adjusted_kernel,
                               gamma=float(gamma), tau=float(tau),
                               b_orig=B, tile_b=tb)

    partials = pl.pallas_call(
        kernel,
        out_shape=jax.ShapeDtypeStruct((num_tiles, 8, 128), jnp.float32),
        grid_spec=pl.GridSpec(
            grid=(num_tiles,),
            in_specs=[
                pl.BlockSpec((tb, c_pad), lambda i: (i, 0)),
                pl.BlockSpec((1, c_pad), lambda i: (0, 0)),
                pl.BlockSpec((tb, 1), lambda i: (i, 0)),
            ],
            out_specs=pl.BlockSpec((1, 8, 128), lambda i: (i, 0, 0)),
        ),
        compiler_params=pltpu.CompilerParams(
            dimension_semantics=("parallel",)),
    )(logits_p, log_priors_p, targets_p)

    total = jnp.sum(partials[:, 0, 0])
    return total / jnp.float32(B)


def _reference(logits, targets, class_priors, gamma=1.0, tau=1.0):
    log_priors = jnp.log(jnp.asarray(class_priors, jnp.float32) + 1e-9)
    adjusted = jnp.asarray(logits, jnp.float32) + tau * log_priors[None, :]
    probs = jax.nn.softmax(adjusted, axis=1)
    tp = jnp.take_along_axis(probs, jnp.asarray(targets)[:, None], axis=1)[:, 0]
    return jnp.mean(((1.0 - tp) ** gamma) * (-jnp.log(tp + 1e-9)))


if __name__ == "__main__":
    key = jax.random.PRNGKey(0)

    # --- Test 1: small demo shape, integer gamma (matches module defaults-ish).
    B, C = 8, 16
    k1, k2, k3, k4, k5, k6 = jax.random.split(key, 6)
    logits = jax.random.normal(k1, (B, C), dtype=jnp.float32)
    targets = jax.random.randint(k2, (B,), 0, C, dtype=jnp.int32)
    raw = jax.random.uniform(k3, (C,), dtype=jnp.float32, minval=0.1, maxval=1.0)
    class_priors = raw / jnp.sum(raw)

    loss = focal_logit_adjusted_loss(logits, targets, class_priors,
                                     gamma=2.0, tau=1.0)
    loss = jax.block_until_ready(loss)
    ref = _reference(logits, targets, class_priors, gamma=2.0, tau=1.0)
    assert jnp.allclose(loss, ref, rtol=1e-5, atol=1e-5), (loss, ref)

    # --- Test 2: non-aligned shapes, multiple batch tiles, non-integer gamma.
    B2, C2 = 40, 130
    logits2 = jax.random.normal(k4, (B2, C2), dtype=jnp.float32)
    targets2 = jax.random.randint(k5, (B2,), 0, C2, dtype=jnp.int32)
    raw2 = jax.random.uniform(k6, (C2,), dtype=jnp.float32, minval=0.1, maxval=1.0)
    priors2 = raw2 / jnp.sum(raw2)

    loss2 = focal_logit_adjusted_loss(logits2, targets2, priors2,
                                      gamma=1.5, tau=0.7, tile_b=16)
    loss2 = jax.block_until_ready(loss2)
    ref2 = _reference(logits2, targets2, priors2, gamma=1.5, tau=0.7)
    assert jnp.allclose(loss2, ref2, rtol=1e-5, atol=1e-5), (loss2, ref2)

    print("KERNEL_OK")
</pallas_src>

<mosaic_0001>
module attributes {stable_mosaic.version = 11 : i64} {
  func.func @_focal_logit_adjusted_kernel(%arg0: i32, %arg1: memref<8x128xf32, #tpu.memory_space<vmem>>, %arg2: memref<1x128xf32, #tpu.memory_space<vmem>>, %arg3: memref<8x1xi32, #tpu.memory_space<vmem>>, %arg4: memref<1x8x128xf32, #tpu.memory_space<vmem>>) attributes {dimension_semantics = [#tpu.dimension_semantics<parallel>], iteration_bounds = array<i64: 1>, scalar_prefetch = 0 : i64, scratch_operands = 0 : i64, tpu.core_type = #tpu.core_type<tc>, window_params = [{transform_indices = @transform_0, window_bounds = array<i64: 8, 128>}, {pipeline_mode = #tpu.pipeline_mode<synchronous>, transform_indices = @transform_1, window_bounds = array<i64: 1, 128>}, {transform_indices = @transform_2, window_bounds = array<i64: 8, 1>}, {transform_indices = @transform_3, window_bounds = array<i64: 1, 8, 128>}]} {
    %c0 = arith.constant 0 : index
    %c0_0 = arith.constant 0 : index
    %0 = vector.load %arg1[%c0, %c0_0] : memref<8x128xf32, #tpu.memory_space<vmem>>, vector<8x128xf32>
    %c0_1 = arith.constant 0 : index
    %c0_2 = arith.constant 0 : index
    %1 = vector.load %arg2[%c0_1, %c0_2] : memref<1x128xf32, #tpu.memory_space<vmem>>, vector<1x128xf32>
    %c0_3 = arith.constant 0 : index
    %c0_4 = arith.constant 0 : index
    %2 = vector.load %arg3[%c0_3, %c0_4] : memref<8x1xi32, #tpu.memory_space<vmem>>, vector<8x1xi32>
    %cst = arith.constant 1.000000e+00 : f32
    %3 = vector.broadcast %cst : f32 to vector<1x128xf32>
    %4 = arith.mulf %3, %1 : vector<1x128xf32>
    %5 = vector.broadcast %4 : vector<1x128xf32> to vector<8x128xf32>
    %6 = arith.addf %0, %5 : vector<8x128xf32>
    %cst_5 = arith.constant dense<0xFF800000> : vector<8xf32>
    %7 = vector.multi_reduction <maximumf>, %6, %cst_5 [1] : vector<8x128xf32> to vector<8xf32>
    %8 = vector.shape_cast %7 : vector<8xf32> to vector<8x1xf32>
    %9 = vector.broadcast %8 : vector<8x1xf32> to vector<8x128xf32>
    %10 = arith.subf %6, %9 : vector<8x128xf32>
    %11 = math.exp %10 : vector<8x128xf32>
    %cst_6 = arith.constant dense<0.000000e+00> : vector<8xf32>
    %12 = vector.multi_reduction <add>, %11, %cst_6 [1] : vector<8x128xf32> to vector<8xf32>
    %13 = vector.shape_cast %12 : vector<8xf32> to vector<8x1xf32>
    %14 = tpu.iota {dimensions = array<i32: 1>} : vector<8x128xi32>
    %15 = vector.broadcast %2 : vector<8x1xi32> to vector<8x128xi32>
    %16 = arith.cmpi eq, %14, %15 : vector<8x128xi32>
    %cst_7 = arith.constant -1.000000e+30 : f32
    %17 = vector.broadcast %cst_7 : f32 to vector<8x128xf32>
    %18 = arith.select %16, %6, %17 : vector<8x128xi1>, vector<8x128xf32>
    %cst_8 = arith.constant dense<0xFF800000> : vector<8xf32>
    %19 = vector.multi_reduction <maximumf>, %18, %cst_8 [1] : vector<8x128xf32> to vector<8xf32>
    %20 = vector.shape_cast %19 : vector<8xf32> to vector<8x1xf32>
    %21 = arith.subf %20, %8 : vector<8x1xf32>
    %22 = math.log %13 : vector<8x1xf32>
    %23 = arith.subf %21, %22 : vector<8x1xf32>
    %24 = math.exp %23 : vector<8x1xf32>
    %cst_9 = arith.constant 9.99999971E-10 : f32
    %25 = vector.broadcast %cst_9 : f32 to vector<8x1xf32>
    %26 = arith.addf %24, %25 : vector<8x1xf32>
    %27 = math.log %26 : vector<8x1xf32>
    %cst_10 = arith.constant 0.000000e+00 : f32
    %28 = vector.broadcast %cst_10 : f32 to vector<8x1xf32>
    %29 = arith.subf %28, %27 : vector<8x1xf32>
    %cst_11 = arith.constant 1.000000e+00 : f32
    %30 = vector.broadcast %cst_11 : f32 to vector<8x1xf32>
    %31 = arith.subf %30, %24 : vector<8x1xf32>
    %32 = arith.mulf %31, %31 : vector<8x1xf32>
    %33 = arith.mulf %32, %29 : vector<8x1xf32>
    %34 = tpu.iota {dimensions = array<i32: 0>} : vector<8x1xi32>
    %c8_i32 = arith.constant 8 : i32
    %35 = arith.muli %arg0, %c8_i32 : i32
    %36 = vector.broadcast %35 : i32 to vector<8x1xi32>
    %37 = arith.addi %34, %36 : vector<8x1xi32>
    %c8_i32_12 = arith.constant 8 : i32
    %38 = vector.broadcast %c8_i32_12 : i32 to vector<8x1xi32>
    %39 = arith.cmpi slt, %37, %38 : vector<8x1xi32>
    %cst_13 = arith.constant 0.000000e+00 : f32
    %40 = vector.broadcast %cst_13 : f32 to vector<8x1xf32>
    %41 = arith.select %39, %33, %40 : vector<8x1xi1>, vector<8x1xf32>
    %42 = vector.shape_cast %41 : vector<8x1xf32> to vector<1x8x1xf32>
    %cst_14 = arith.constant dense<0.000000e+00> : vector<1xf32>
    %43 = vector.multi_reduction <add>, %42, %cst_14 [1, 2] : vector<1x8x1xf32> to vector<1xf32>
    %44 = vector.shape_cast %43 : vector<1xf32> to vector<1x1x1xf32>
    %45 = vector.extract %44[0, 0, 0] : f32 from vector<1x1x1xf32>
    %46 = vector.broadcast %45 : f32 to vector<1x8x128xf32>
    %c0_15 = arith.constant 0 : index
    %c0_16 = arith.constant 0 : index
    %c0_17 = arith.constant 0 : index
    %47 = vector.load %arg4[%c0_15, %c0_16, %c0_17] : memref<1x8x128xf32, #tpu.memory_space<vmem>>, vector<1x8x128xf32>
    tpu.vector_store %arg4[%c0_15, %c0_16, %c0_17], %46 {strides = array<i32>} : memref<1x8x128xf32, #tpu.memory_space<vmem>>, vector<1x8x128xf32>,
    return
  }
  func.func @transform_0(%arg0: i32) -> (i32, i32) {
    %c0_i32 = arith.constant 0 : i32
    %c0_i32_0 = arith.constant 0 : i32
    return %arg0, %c0_i32 : i32, i32
  }
  func.func @transform_1(%arg0: i32) -> (i32, i32) {
    %c0_i32 = arith.constant 0 : i32
    %c0_i32_0 = arith.constant 0 : i32
    %c0_i32_1 = arith.constant 0 : i32
    return %c0_i32, %c0_i32_0 : i32, i32
  }
  func.func @transform_2(%arg0: i32) -> (i32, i32) {
    %c0_i32 = arith.constant 0 : i32
    %c0_i32_0 = arith.constant 0 : i32
    return %arg0, %c0_i32 : i32, i32
  }
  func.func @transform_3(%arg0: i32) -> (i32, i32, i32) {
    %c0_i32 = arith.constant 0 : i32
    %c0_i32_0 = arith.constant 0 : i32
    %c0_i32_1 = arith.constant 0 : i32
    return %arg0, %c0_i32, %c0_i32_0 : i32, i32, i32
  }
}

</mosaic_0001>

<llo_original>
// kernel: tpu_custom_call.1
$region0: #{tpu_custom_call.1}
  #allocation0 [shape = 'u32[]', space=smem, size = 0x4, offset = 0x4, fixed_abs, tag = 'smem constant byte address 0x4 - core index']
  #allocation1 [shape = 'u32[72,128]{1,0:T(1,128)}', space=vmem, size = 0x9000, scoped, tag = 'internal scratch']
  %s0 = inlined_call_operand.vmem [shape: f32[8,128], index: 0, kind: input, shape index: {}]
  %s1 = inlined_call_operand.vmem [shape: f32[1,128], index: 1, kind: input, shape index: {}]
  %s2 = inlined_call_operand.vmem [shape: s32[8,1], index: 2, kind: input, shape index: {}]
  %s3 = inlined_call_operand.hbm [shape: f32[1,8,128], index: 3, kind: output, shape index: {}]
  %s4 = sld [smem:[#allocation0]]
  $region22: #{tpu_custom_call.1} parent=0
    _
  %s6 = ssub.s32 1, %s4
  %s7 = scalar_select 0, %s6, %s4
  $region1: #{tpu_custom_call.1} parent=0
    #allocation2 [shape = 'u8[4096]{0}', space=vmem, size = 0x1000, scoped, tag = 'output window, operand 0, single buffered']
    #allocation3 [shape = 's32[1]{0}', space=sflag, size = 0x4, scoped, tag = 'scoped memory for tpu_custom_call.1']
    %8 = vsyncpa [#allocation3], 0
    // Predicated region
    $region2: #{tpu_custom_call.1} parent=1 // pred_check
      _
    $region3: #{tpu_custom_call.1} parent=1 // pred_check_branch
      %10 = sbr.rel (0) target = $region5
    $region4: #{tpu_custom_call.1} parent=1 // pred_region
      _
    $region5: #{tpu_custom_call.1} parent=1 // pred_fallthru
      _
    // Predicated region
    $region6: #{tpu_custom_call.1} parent=1 // pred_check
      _
    $region7: #{tpu_custom_call.1} parent=1 // pred_check_branch
      %12 = sbr.rel (0) target = $region9
    $region8: #{tpu_custom_call.1} parent=1 // pred_region
      _
    $region9: #{tpu_custom_call.1} parent=1 // pred_fallthru
      _
    // Predicated region
    $region10: #{tpu_custom_call.1} parent=1 // pred_check
      _
    $region11: #{tpu_custom_call.1} parent=1 // pred_check_branch
      %14 = sbr.rel (0) target = $region13
    $region12: #{tpu_custom_call.1} parent=1 // pred_region
      _
    $region13: #{tpu_custom_call.1} parent=1 // pred_fallthru
      _
    %v15 = vld [vmem:[%s0] sm:$0xff]
    %v16 = vld [vmem:[%s1] sm:$0x1]
    %v17 = vld [vmem:[%s2] sm:$0xff]
    %v19 = vperm.slane %v16, 0
    %v21 = vadd.f32 %v15, %v19
    %22 = vmax.xlane.f32.xlu0 %v21
    %v23 = vpop.xlane.xlu0 %22
    %v24 = vsub.f32 %v21, %v23
    %v25 = vmul.f32 %v24, 1.442695
    %v26 = vpow.pop %v25
    %27 = vadd.xlane.f32.xlu0 %v26
    %v28 = vpop.xlane.xlu0 %27
    %v29 = vlaneseq
    %v30 = vand.u32 %v29, 127
    %31 = vset.pattern.permute.xlu0 0
    %32 = vperm.xlu0 %31, %v17
    %v33 = vpop.permute.xlu0 %32
    %vm34 = vcmp.eq.s32.totalorder %v30, %v33
    %v35 = vsel %vm34, %v21, -1e+30
    %36 = vmax.xlane.f32.xlu0 %v35
    %v37 = vpop.xlane.xlu0 %36
    %v38 = vsub.f32 %v37, %v23
    %v39 = vlog2.pop %v28
    %v40 = vmul.f32 %v39, 0.6931472
    %v41 = vsub.f32 %v38, %v40
    %v42 = vmul.f32 %v41, 1.442695
    %v43 = vpow.pop %v42
    %v44 = vadd.f32 %v43, 1e-09
    %v45 = vlog2.pop %v44
    %v46 = vmul.f32 %v45, 0.6931472
    %v47 = vsub.f32 0.0, %v46
    %v48 = vsub.f32 1.0, %v43
    %v49 = vmul.f32 %v48, %v48
    %v50 = vmul.f32 %v49, %v47
    %v51 = vlaneseq
    %v52 = vshrl.u32 %v51, 7
    %s53 = smul.u32 0, 8
    %v54 = vstv %s53
    %v55 = vadd.s32 %v52, %v54
    %vm56 = vcmp.lt.s32.totalorder %v55, 8
    %v57 = vsel %vm56, %v50, 0.0
    %vm58 = vcmask 7168
    %v59 = vsel %vm58, %v57, 0.0
    %60 = vadd.xlane.f32.xlu0 %v59
    %v61 = vpop.xlane.xlu0 %60
    %v62 = vrot.slane %v61, 4
    %v63 = vadd.f32 %v61, %v62
    %v64 = vrot.slane %v63, 2
    %v65 = vadd.f32 %v63, %v64
    %v66 = vrot.slane %v65, 1
    %v67 = vadd.f32 %v65, %v66
    %s68 = vtos %v67
    %v69 = vstv %s68
    %70 = vst [vmem:[#allocation2] sm:$0xff] %v69
    // Predicated region
    $region14: #{tpu_custom_call.1} parent=1 // pred_check
      _
    $region15: #{tpu_custom_call.1} parent=1 // pred_check_branch
      %72 = sbr.rel (0) target = $region17
    $region16: #{tpu_custom_call.1} parent=1 // pred_region
      %74 = vsyncadd [#allocation3], 0
      %s76 = sshll.u32 [#allocation2], 4
      %s77 = int_to_ptr.vmem [resolvable:$true] %s76
      %s78 = sshll.u32 %s3, 4
      %s79 = int_to_ptr.hbm [resolvable:$true] %s78
      %81 = dma.vmem_to_hbm [thread:$0]  %s77, 128, %s79, [#allocation3]
    $region17: #{tpu_custom_call.1} parent=1 // pred_fallthru
      _
    // Predicated region
    $region18: #{tpu_custom_call.1} parent=1 // pred_check
      _
    $region19: #{tpu_custom_call.1} parent=1 // pred_check_branch
      %83 = sbr.rel (0) target = $region21
    $region20: #{tpu_custom_call.1} parent=1 // pred_region
      %85 = dma.done [#allocation3], 128
    $region21: #{tpu_custom_call.1} parent=1 // pred_fallthru
      _
    %86 = vsyncpa [#allocation3], 1

</llo_original>
